<compile_context>
chip_gen: v5e
topology: v5e:2x2
jax: 0.10.0
libtpu: 0.0.40
codegen_flags: <defaults>
</compile_context>

<pallas_src>
import functools
import math

import jax
import jax.numpy as jnp
from jax.experimental import pallas as pl
from jax.experimental.pallas import tpu as pltpu


def _attention_core_kernel(q_ref, k_ref, v_ref, wo_ref, bo_ref, out_ref, *,
                           compute_dtype, exact_softmax):
    """One (batch, query-tile) cell: (softmax(QK^T) V) @ Wo + bo.

    q_ref : (1, heads, tq, d)  head-major, pre-scaled, compute_dtype
    k_ref : (1, heads, m,  d)  head-major, compute_dtype
    v_ref : (1, heads, m,  d)  head-major, compute_dtype
    wo_ref: (heads, d, dim)    compute_dtype
    bo_ref: (1, dim)           float32
    out   : (1, tq, dim)
    """
    qh = q_ref[0]                                            # (h, tq, d)
    kh = k_ref[0]                                            # (h, m,  d)
    vh = v_ref[0]                                            # (h, m,  d)

    # Scores for all heads in one batched dot_general (no per-head lane slices).
    s = jnp.einsum('htd,hmd->htm', qh, kh,
                   preferred_element_type=jnp.float32)       # (h, tq, m) f32
    s = s - jnp.max(s, axis=-1, keepdims=True)               # stable softmax
    p = jnp.exp(s)
    denom = jnp.sum(p, axis=-1, keepdims=True)
    if exact_softmax:
        attn = p / denom
    else:
        attn = p * pl.reciprocal(denom, approx=True)         # EUP slot
    attn = attn.astype(compute_dtype)

    # attn @ V, batched over heads.
    o = jnp.einsum('htm,hmd->htd', attn, vh,
                   preferred_element_type=jnp.float32)       # (h, tq, d) f32

    # Output projection: per-head (tq, d) @ (d, dim), batched over heads, then
    # a cheap VPU reduction over the leading heads axis + bias.
    proj = jnp.einsum('htd,hdo->hto', o.astype(compute_dtype), wo_ref[...],
                      preferred_element_type=jnp.float32)    # (h, tq, dim)
    out = jnp.sum(proj, axis=0) + bo_ref[...]                # (tq, dim) f32
    out_ref[0] = out.astype(out_ref.dtype)


def _pick_q_tile(n):
    """Largest tile in {256,...,8} that evenly divides n, else n (one block)."""
    for t in (256, 128, 64, 32, 16, 8):
        if n >= t and n % t == 0:
            return t
    return n


def attention_qkv(q, k, v, params, *, heads, dim_head,
                  compute_dtype=jnp.bfloat16):
    """q: (b, n, dim); k, v: (b, m, dim).  Returns (b, n, dim)."""
    b, n, dim = q.shape
    bk, m, _ = k.shape
    assert bk == b, "einsum 'b h i d, b h j d' requires matching batch dims"
    inner = heads * dim_head
    scale = dim_head ** -0.5
    wq, wk, wv, wo, bo = params
    cdt = jnp.dtype(compute_dtype)
    out_dt = q.dtype

    # ---- Projections hoisted to XLA: batched over b, full-width MXU shapes,
    # compute-dtype operands with f32 accumulation, scale folded into Q once.
    qp = jnp.einsum('bnd,de->bne', q.astype(cdt), wq.astype(cdt),
                    preferred_element_type=jnp.float32) * scale
    kp = jnp.einsum('bmd,de->bme', k.astype(cdt), wk.astype(cdt),
                    preferred_element_type=jnp.float32)
    vp = jnp.einsum('bmd,de->bme', v.astype(cdt), wv.astype(cdt),
                    preferred_element_type=jnp.float32)
    # Head-major layout so the kernel only touches offset-0 lanes per head.
    qh = qp.reshape(b, n, heads, dim_head).transpose(0, 2, 1, 3).astype(cdt)
    kh = kp.reshape(b, m, heads, dim_head).transpose(0, 2, 1, 3).astype(cdt)
    vh = vp.reshape(b, m, heads, dim_head).transpose(0, 2, 1, 3).astype(cdt)
    wo_r = wo.reshape(heads, dim_head, dim).astype(cdt)        # pre-cast once
    bo2 = bo.reshape(1, dim).astype(jnp.float32)

    tq = _pick_q_tile(n)
    nq = n // tq

    # ---- VMEM budget (double-buffered streaming blocks + constant blocks +
    # f32 score temporaries), clamped to limits that are safe on v5e/v6e/v7x.
    def nbytes(shape, dt):
        return math.prod(shape) * jnp.dtype(dt).itemsize

    ws = (2 * (nbytes((heads, tq, dim_head), cdt)
               + 2 * nbytes((heads, m, dim_head), cdt)
               + nbytes((tq, dim), out_dt))
          + 2 * nbytes((heads, dim_head, dim), cdt)
          + 2 * nbytes((1, dim), jnp.float32)
          + 2 * nbytes((heads, tq, m), jnp.float32))
    vmem_limit = int(min(64 * 2 ** 20, max(32 * 2 ** 20, 2 * ws)))

    flops = 2 * b * (2 * n * m * inner + n * inner * dim)
    bytes_accessed = (qh.size * cdt.itemsize + kh.size * cdt.itemsize
                      + vh.size * cdt.itemsize + wo_r.size * cdt.itemsize
                      + bo2.size * 4 + b * n * dim * jnp.dtype(out_dt).itemsize)
    cost = pl.CostEstimate(flops=flops,
                           transcendentals=b * heads * n * m,
                           bytes_accessed=bytes_accessed)

    kernel = functools.partial(
        _attention_core_kernel,
        compute_dtype=cdt,
        exact_softmax=(cdt == jnp.dtype(jnp.float32)))

    return pl.pallas_call(
        kernel,
        out_shape=jax.ShapeDtypeStruct((b, n, dim), out_dt),
        grid_spec=pltpu.PrefetchScalarGridSpec(
            num_scalar_prefetch=0,
            grid=(b, nq),
            in_specs=[
                pl.BlockSpec((1, heads, tq, dim_head),
                             lambda ib, iq: (ib, 0, iq, 0)),      # q (head-major)
                pl.BlockSpec((1, heads, m, dim_head),
                             lambda ib, iq: (ib, 0, 0, 0)),       # k (head-major)
                pl.BlockSpec((1, heads, m, dim_head),
                             lambda ib, iq: (ib, 0, 0, 0)),       # v (head-major)
                pl.BlockSpec((heads, dim_head, dim),
                             lambda ib, iq: (0, 0, 0)),           # wo (constant)
                pl.BlockSpec((1, dim),
                             lambda ib, iq: (0, 0)),              # bias (constant)
            ],
            out_specs=pl.BlockSpec((1, tq, dim),
                                   lambda ib, iq: (ib, iq, 0)),
        ),
        compiler_params=pltpu.CompilerParams(
            dimension_semantics=("parallel", "parallel"),
            vmem_limit_bytes=vmem_limit),
        cost_estimate=cost,
    )(qh, kh, vh, wo_r, bo2)


def reference_attention(q, k, v, params, *, heads, dim_head):
    wq, wk, wv, wo, bo = params
    scale = dim_head ** -0.5
    b, n, dim = q.shape
    m = k.shape[1]
    qp = (q @ wq).reshape(b, n, heads, dim_head).transpose(0, 2, 1, 3)
    kp = (k @ wk).reshape(b, m, heads, dim_head).transpose(0, 2, 1, 3)
    vp = (v @ wv).reshape(b, m, heads, dim_head).transpose(0, 2, 1, 3)
    dots = jnp.einsum('bhid,bhjd->bhij', qp, kp) * scale
    attn = jax.nn.softmax(dots, axis=-1)
    o = jnp.einsum('bhij,bhjd->bhid', attn, vp)
    o = o.transpose(0, 2, 1, 3).reshape(b, n, heads * dim_head)
    return o @ wo + bo


def _make_inputs(key, *, b, n, m, dim, heads, dim_head):
    inner = heads * dim_head
    kq, kk, kv, kwq, kwk, kwv, kwo, kbo = jax.random.split(key, 8)
    q = jax.random.normal(kq, (b, n, dim), jnp.float32)
    k = jax.random.normal(kk, (b, m, dim), jnp.float32)
    v = jax.random.normal(kv, (b, m, dim), jnp.float32)
    s_in = dim ** -0.5
    s_inner = inner ** -0.5
    wq = jax.random.uniform(kwq, (dim, inner), jnp.float32, -s_in, s_in)
    wk = jax.random.uniform(kwk, (dim, inner), jnp.float32, -s_in, s_in)
    wv = jax.random.uniform(kwv, (dim, inner), jnp.float32, -s_in, s_in)
    wo = jax.random.uniform(kwo, (inner, dim), jnp.float32, -s_inner, s_inner)
    bo = jax.random.uniform(kbo, (dim,), jnp.float32, -s_inner, s_inner)
    return q, k, v, (wq, wk, wv, wo, bo)


if __name__ == "__main__":
    key = jax.random.PRNGKey(0)
    k1, k2 = jax.random.split(key)

    # 1) Small shapes consistent with the module forward; f32 operands and
    #    exact softmax division -> tight correctness check.
    heads, dim_head = 4, 8
    q, k, v, params = _make_inputs(k1, b=2, n=8, m=8, dim=32,
                                   heads=heads, dim_head=dim_head)
    out = attention_qkv(q, k, v, params, heads=heads, dim_head=dim_head,
                        compute_dtype=jnp.float32)
    out = jax.block_until_ready(out)
    ref = reference_attention(q, k, v, params, heads=heads, dim_head=dim_head)
    assert out.shape == ref.shape
    assert jnp.allclose(out, ref, atol=2e-3, rtol=2e-3), "f32 mismatch vs ref"

    # 2) Lane/MXU-aligned shapes exercising the query-tile grid axis; bf16
    #    matmul operands (f32 accumulation, f32 softmax), loose check.
    heads, dim_head = 4, 32
    q, k, v, params = _make_inputs(k2, b=2, n=256, m=128, dim=128,
                                   heads=heads, dim_head=dim_head)
    out = attention_qkv(q, k, v, params, heads=heads, dim_head=dim_head,
                        compute_dtype=jnp.bfloat16)
    out = jax.block_until_ready(out)
    ref = reference_attention(q, k, v, params, heads=heads, dim_head=dim_head)
    assert out.shape == ref.shape
    assert jnp.allclose(out, ref, atol=5e-2, rtol=5e-2), "bf16 mismatch vs ref"

    print("KERNEL_OK")
</pallas_src>

<mosaic_0001>
module attributes {stable_mosaic.version = 11 : i64} {
  func.func @_attention_core_kernel(%arg0: i32, %arg1: i32, %arg2: memref<1x4x8x8xf32, #tpu.memory_space<vmem>>, %arg3: memref<1x4x8x8xf32, #tpu.memory_space<vmem>>, %arg4: memref<1x4x8x8xf32, #tpu.memory_space<vmem>>, %arg5: memref<4x8x32xf32, #tpu.memory_space<vmem>>, %arg6: memref<1x32xf32, #tpu.memory_space<vmem>>, %arg7: memref<1x8x32xf32, #tpu.memory_space<vmem>>) attributes {dimension_semantics = [#tpu.dimension_semantics<parallel>, #tpu.dimension_semantics<parallel>], iteration_bounds = array<i64: 2, 1>, scalar_prefetch = 0 : i64, scratch_operands = 0 : i64, tpu.core_type = #tpu.core_type<tc>, window_params = [{transform_indices = @transform_0, window_bounds = array<i64: 1, 4, 8, 8>}, {transform_indices = @transform_1, window_bounds = array<i64: 1, 4, 8, 8>}, {transform_indices = @transform_2, window_bounds = array<i64: 1, 4, 8, 8>}, {pipeline_mode = #tpu.pipeline_mode<synchronous>, transform_indices = @transform_3, window_bounds = array<i64: 4, 8, 32>}, {pipeline_mode = #tpu.pipeline_mode<synchronous>, transform_indices = @transform_4, window_bounds = array<i64: 1, 32>}, {transform_indices = @transform_5, window_bounds = array<i64: 1, 8, 32>}]} {
    %c0 = arith.constant 0 : index
    %c0_0 = arith.constant 0 : index
    %c0_1 = arith.constant 0 : index
    %c0_2 = arith.constant 0 : index
    %0 = vector.load %arg2[%c0, %c0_0, %c0_1, %c0_2] : memref<1x4x8x8xf32, #tpu.memory_space<vmem>>, vector<1x4x8x8xf32>
    %1 = vector.shape_cast %0 : vector<1x4x8x8xf32> to vector<4x8x8xf32>
    %c0_3 = arith.constant 0 : index
    %c0_4 = arith.constant 0 : index
    %c0_5 = arith.constant 0 : index
    %c0_6 = arith.constant 0 : index
    %2 = vector.load %arg3[%c0_3, %c0_4, %c0_5, %c0_6] : memref<1x4x8x8xf32, #tpu.memory_space<vmem>>, vector<1x4x8x8xf32>
    %3 = vector.shape_cast %2 : vector<1x4x8x8xf32> to vector<4x8x8xf32>
    %c0_7 = arith.constant 0 : index
    %c0_8 = arith.constant 0 : index
    %c0_9 = arith.constant 0 : index
    %c0_10 = arith.constant 0 : index
    %4 = vector.load %arg4[%c0_7, %c0_8, %c0_9, %c0_10] : memref<1x4x8x8xf32, #tpu.memory_space<vmem>>, vector<1x4x8x8xf32>
    %5 = vector.shape_cast %4 : vector<1x4x8x8xf32> to vector<4x8x8xf32>
    "tpu.trace_start"() <{level = 10 : i32, message = "htd,hmd->htm"}> : () -> ()
    %cst = arith.constant dense<0.000000e+00> : vector<4x8x8xf32>
    %6 = tpu.matmul %1, %3, %cst {dimension_numbers = #tpu.dot_dimension_numbers<[2], [2], [1], [1], [0, 0, 0, 1, 1, 1], [0], [0]>} : vector<4x8x8xf32>, vector<4x8x8xf32>, vector<4x8x8xf32> -> vector<4x8x8xf32>
    "tpu.trace_stop"() : () -> ()
    %cst_11 = arith.constant dense<0xFF800000> : vector<4x8xf32>
    %7 = vector.multi_reduction <maximumf>, %6, %cst_11 [2] : vector<4x8x8xf32> to vector<4x8xf32>
    %8 = vector.shape_cast %7 : vector<4x8xf32> to vector<4x8x1xf32>
    %9 = vector.broadcast %8 : vector<4x8x1xf32> to vector<4x8x8xf32>
    %10 = arith.subf %6, %9 : vector<4x8x8xf32>
    %11 = math.exp %10 : vector<4x8x8xf32>
    %cst_12 = arith.constant dense<0.000000e+00> : vector<4x8xf32>
    %12 = vector.multi_reduction <add>, %11, %cst_12 [2] : vector<4x8x8xf32> to vector<4x8xf32>
    %13 = vector.shape_cast %12 : vector<4x8xf32> to vector<4x8x1xf32>
    %14 = vector.broadcast %13 : vector<4x8x1xf32> to vector<4x8x8xf32>
    %15 = arith.divf %11, %14 : vector<4x8x8xf32>
    "tpu.trace_start"() <{level = 10 : i32, message = "htm,hmd->htd"}> : () -> ()
    %cst_13 = arith.constant dense<0.000000e+00> : vector<4x8x8xf32>
    %16 = tpu.matmul %15, %5, %cst_13 {dimension_numbers = #tpu.dot_dimension_numbers<[2], [1], [1], [2], [0, 0, 0, 1, 1, 2], [0], [0]>} : vector<4x8x8xf32>, vector<4x8x8xf32>, vector<4x8x8xf32> -> vector<4x8x8xf32>
    "tpu.trace_stop"() : () -> ()
    %c0_14 = arith.constant 0 : index
    %c0_15 = arith.constant 0 : index
    %c0_16 = arith.constant 0 : index
    %17 = vector.load %arg5[%c0_14, %c0_15, %c0_16] : memref<4x8x32xf32, #tpu.memory_space<vmem>>, vector<4x8x32xf32>
    "tpu.trace_start"() <{level = 10 : i32, message = "htd,hdo->hto"}> : () -> ()
    %cst_17 = arith.constant dense<0.000000e+00> : vector<4x8x32xf32>
    %18 = tpu.matmul %16, %17, %cst_17 {dimension_numbers = #tpu.dot_dimension_numbers<[2], [1], [1], [2], [0, 0, 0, 1, 1, 2], [0], [0]>} : vector<4x8x8xf32>, vector<4x8x32xf32>, vector<4x8x32xf32> -> vector<4x8x32xf32>
    "tpu.trace_stop"() : () -> ()
    %cst_18 = arith.constant dense<0.000000e+00> : vector<8x32xf32>
    %19 = vector.multi_reduction <add>, %18, %cst_18 [0] : vector<4x8x32xf32> to vector<8x32xf32>
    %c0_19 = arith.constant 0 : index
    %c0_20 = arith.constant 0 : index
    %20 = vector.load %arg6[%c0_19, %c0_20] : memref<1x32xf32, #tpu.memory_space<vmem>>, vector<1x32xf32>
    %21 = vector.broadcast %20 : vector<1x32xf32> to vector<8x32xf32>
    %22 = arith.addf %19, %21 : vector<8x32xf32>
    %c0_21 = arith.constant 0 : index
    %c0_22 = arith.constant 0 : index
    %c0_23 = arith.constant 0 : index
    %23 = vector.load %arg7[%c0_21, %c0_22, %c0_23] : memref<1x8x32xf32, #tpu.memory_space<vmem>>, vector<1x8x32xf32>
    %24 = vector.shape_cast %23 : vector<1x8x32xf32> to vector<8x32xf32>
    %25 = vector.shape_cast %22 : vector<8x32xf32> to vector<1x8x32xf32>
    tpu.vector_store %arg7[%c0_21, %c0_22, %c0_23], %25 {strides = array<i32>} : memref<1x8x32xf32, #tpu.memory_space<vmem>>, vector<1x8x32xf32>,
    return
  }
  func.func @transform_0(%arg0: i32, %arg1: i32) -> (i32, i32, i32, i32) {
    %c0_i32 = arith.constant 0 : i32
    %c0_i32_0 = arith.constant 0 : i32
    %c0_i32_1 = arith.constant 0 : i32
    return %arg0, %c0_i32, %arg1, %c0_i32_0 : i32, i32, i32, i32
  }
  func.func @transform_1(%arg0: i32, %arg1: i32) -> (i32, i32, i32, i32) {
    %c0_i32 = arith.constant 0 : i32
    %c0_i32_0 = arith.constant 0 : i32
    %c0_i32_1 = arith.constant 0 : i32
    %c0_i32_2 = arith.constant 0 : i32
    return %arg0, %c0_i32, %c0_i32_0, %c0_i32_1 : i32, i32, i32, i32
  }
  func.func @transform_2(%arg0: i32, %arg1: i32) -> (i32, i32, i32, i32) {
    %c0_i32 = arith.constant 0 : i32
    %c0_i32_0 = arith.constant 0 : i32
    %c0_i32_1 = arith.constant 0 : i32
    %c0_i32_2 = arith.constant 0 : i32
    return %arg0, %c0_i32, %c0_i32_0, %c0_i32_1 : i32, i32, i32, i32
  }
  func.func @transform_3(%arg0: i32, %arg1: i32) -> (i32, i32, i32) {
    %c0_i32 = arith.constant 0 : i32
    %c0_i32_0 = arith.constant 0 : i32
    %c0_i32_1 = arith.constant 0 : i32
    %c0_i32_2 = arith.constant 0 : i32
    return %c0_i32, %c0_i32_0, %c0_i32_1 : i32, i32, i32
  }
  func.func @transform_4(%arg0: i32, %arg1: i32) -> (i32, i32) {
    %c0_i32 = arith.constant 0 : i32
    %c0_i32_0 = arith.constant 0 : i32
    %c0_i32_1 = arith.constant 0 : i32
    return %c0_i32, %c0_i32_0 : i32, i32
  }
  func.func @transform_5(%arg0: i32, %arg1: i32) -> (i32, i32, i32) {
    %c0_i32 = arith.constant 0 : i32
    %c0_i32_0 = arith.constant 0 : i32
    return %arg0, %arg1, %c0_i32 : i32, i32, i32
  }
}

</mosaic_0001>

<llo_original>
// kernel: tpu_custom_call.1
$region0: #{tpu_custom_call.1}
  #allocation0 [shape = 'u32[]', space=smem, size = 0x4, offset = 0x4, fixed_abs, tag = 'smem constant byte address 0x4 - core index']
  #allocation1 [shape = 'u32[72,128]{1,0:T(1,128)}', space=vmem, size = 0x9000, scoped, tag = 'internal scratch']
  %s0 = inlined_call_operand.hbm [shape: f32[2,4,8,8], index: 0, kind: input, shape index: {}]
  %s1 = inlined_call_operand.hbm [shape: f32[2,4,8,8], index: 1, kind: input, shape index: {}]
  %s2 = inlined_call_operand.hbm [shape: f32[2,4,8,8], index: 2, kind: input, shape index: {}]
  %s3 = inlined_call_operand.hbm [shape: f32[4,8,32], index: 3, kind: input, shape index: {}]
  %s4 = inlined_call_operand.vmem [shape: f32[1,32], index: 4, kind: input, shape index: {}]
  %s5 = inlined_call_operand.hbm [shape: f32[2,8,32], index: 5, kind: output, shape index: {}]
  %s6 = sld [smem:[#allocation0]]
  $region69: #{tpu_custom_call.1} parent=0
    _
  %s8 = ssub.s32 1, %s6
  %s9 = scalar_select 0, %s8, %s6
  $region1: #{tpu_custom_call.1} parent=0
    #allocation2 [shape = 'u8[32768]{0}', space=vmem, size = 0x8000, scoped, tag = 'input window, operand 0']
    #allocation3 [shape = 's32[2]{0}', space=sflag, size = 0x8, scoped, tag = 'scoped memory for tpu_custom_call.1']
    #allocation4 [shape = 's32[2]{0}', space=sflag, size = 0x8, scoped, tag = 'scoped memory for tpu_custom_call.1']
    #allocation5 [shape = 'u8[32768]{0}', space=vmem, size = 0x8000, scoped, tag = 'input window, operand 1']
    #allocation6 [shape = 's32[2]{0}', space=sflag, size = 0x8, scoped, tag = 'scoped memory for tpu_custom_call.1']
    #allocation7 [shape = 'u8[32768]{0}', space=vmem, size = 0x8000, scoped, tag = 'input window, operand 2']
    #allocation8 [shape = 'u8[16384]{0}', space=vmem, size = 0x4000, scoped, tag = 'input window, operand 3, single buffered']
    #allocation9 [shape = 's32[1]{0}', space=sflag, size = 0x4, scoped, tag = 'scoped memory for tpu_custom_call.1']
    #allocation10 [shape = 'u8[8192]{0}', space=vmem, size = 0x2000, scoped, tag = 'output window, operand 0']
    %10 = vsyncpa [#allocation3], 0
    %s11 = scalar_lea.sflag [#allocation3], 1
    %12 = vsyncpa %s11, 0
    %13 = vsyncpa [#allocation6], 0
    %s14 = scalar_lea.sflag [#allocation6], 1
    %15 = vsyncpa %s14, 0
    %16 = vsyncpa [#allocation9], 0
    %17 = vsyncpa [#allocation4], 0
    %s18 = scalar_lea.sflag [#allocation4], 1
    %19 = vsyncpa %s18, 0
    loop: start=0, step=1, limit=4
    $region2: #{tpu_custom_call.1} parent=1 // loop_pre_header
      _
    $region3: #{tpu_custom_call.1} parent=1 // loop_header
      %s21 = sphi 0, %s25
      %p22 = scmp.ge.s32.totalorder %s21, 4
      %s28 = sphi 0, %s40
      %s29 = sphi 0, %s36
      %s30 = sphi 0, %s28
      %s31 = sphi 0, %s29
      %s32 = sphi 0, %s30
      %s33 = sphi 0, %s31
      %s45 = sphi 0, %s47
      %s48 = sphi 0, %s45
      %s49 = sphi 0, %s48
      %s65 = sphi 0, %s49
      %s71 = sphi 0, %s73
      %s74 = sphi 0, %s71
      %s75 = sphi 0, %s74
      %s91 = sphi 0, %s75
      %s97 = sphi 0, %s99
      %s100 = sphi 0, %s97
      %s101 = sphi 0, %s100
      %s117 = sphi 0, %s101
      %s121 = sphi 0, %s121
      %s123 = sphi 0, %s121
      %s124 = sphi 0, %s123
      %s138 = sphi 0, %s124
      %s142 = sphi 0, %s142
      %s144 = sphi 0, %s142
      %s145 = sphi 0, %s144
      %s159 = sphi 0, %s145
      %s167 = sphi 0, %s169
      %s170 = sphi 0, %s167
      %s171 = sphi 0, %s170
      %s187 = sphi 0, %s171
    $region4: #{tpu_custom_call.1} parent=1 // loop_header_branch
      %24 = sbr.rel (%p22) target = $region8
    $region5: #{tpu_custom_call.1} parent=1 // loop_body
      %s26 = ssub.s32 %s21, 1
      %s27 = ssub.s32 %s21, 2
      %s34 = sadd.s32 1, %s29
      %p35 = scmp.ge.s32.totalorder %s34, 1
      %s36 = scalar_select %p35, 0, %s34
      %s37 = sadd.s32 1, %s28
      %s38 = scalar_select %p35, %s37, %s28
      %p39 = scmp.ge.s32.totalorder %s38, 2
      %s40 = scalar_select %p39, 0, %s38
      %s41 = ssub.s32 %s28, %s40
      %s42 = ssub.s32 %s29, %s36
      %s43 = sor.u32 %s41, %s42
      %p44 = scmp.eq.s32.totalorder %s43, 0
      %s46 = sadd.s32 %s45, 1
      %s47 = scalar_select %p44, %s45, %s46
      %p50 = pneg %p44
      %p51 = scmp.eq.s32.totalorder %s21, 1
      %p52 = por %p50, %p51
      %p53 = scmp.ne.s32.totalorder %s45, %s48
      %p54 = scmp.eq.s32.totalorder %s21, 0
      %p55 = por %p53, %p54
      %p56 = scmp.ne.s32.totalorder %s45, %s48
      %p57 = scmp.eq.s32.totalorder %s26, 1
      %p58 = por %p56, %p57
      %p59 = scmp.ne.s32.totalorder %s48, %s49
      %p60 = scmp.eq.s32.totalorder %s26, 0
      %p61 = por %p59, %p60
      %p62 = scmp.ne.s32.totalorder %s48, %s49
      %p63 = scmp.eq.s32.totalorder %s27, 1
      %p64 = por %p62, %p63
      %p66 = scmp.ne.s32.totalorder %s49, %s65
      %p67 = scmp.eq.s32.totalorder %s27, 0
      %p68 = por %p66, %p67
      %s69 = ssub.s32 %s28, %s40
      %p70 = scmp.eq.s32.totalorder %s69, 0
      %s72 = sadd.s32 %s71, 1
      %s73 = scalar_select %p70, %s71, %s72
      %p76 = pneg %p70
      %p77 = scmp.eq.s32.totalorder %s21, 1
      %p78 = por %p76, %p77
      %p79 = scmp.ne.s32.totalorder %s71, %s74
      %p80 = scmp.eq.s32.totalorder %s21, 0
      %p81 = por %p79, %p80
      %p82 = scmp.ne.s32.totalorder %s71, %s74
      %p83 = scmp.eq.s32.totalorder %s26, 1
      %p84 = por %p82, %p83
      %p85 = scmp.ne.s32.totalorder %s74, %s75
      %p86 = scmp.eq.s32.totalorder %s26, 0
      %p87 = por %p85, %p86
      %p88 = scmp.ne.s32.totalorder %s74, %s75
      %p89 = scmp.eq.s32.totalorder %s27, 1
      %p90 = por %p88, %p89
      %p92 = scmp.ne.s32.totalorder %s75, %s91
      %p93 = scmp.eq.s32.totalorder %s27, 0
      %p94 = por %p92, %p93
      %s95 = ssub.s32 %s28, %s40
      %p96 = scmp.eq.s32.totalorder %s95, 0
      %s98 = sadd.s32 %s97, 1
      %s99 = scalar_select %p96, %s97, %s98
      %p102 = pneg %p96
      %p103 = scmp.eq.s32.totalorder %s21, 1
      %p104 = por %p102, %p103
      %p105 = scmp.ne.s32.totalorder %s97, %s100
      %p106 = scmp.eq.s32.totalorder %s21, 0
      %p107 = por %p105, %p106
      %p108 = scmp.ne.s32.totalorder %s97, %s100
      %p109 = scmp.eq.s32.totalorder %s26, 1
      %p110 = por %p108, %p109
      %p111 = scmp.ne.s32.totalorder %s100, %s101
      %p112 = scmp.eq.s32.totalorder %s26, 0
      %p113 = por %p111, %p112
      %p114 = scmp.ne.s32.totalorder %s100, %s101
      %p115 = scmp.eq.s32.totalorder %s27, 1
      %p116 = por %p114, %p115
      %p118 = scmp.ne.s32.totalorder %s101, %s117
      %p119 = scmp.eq.s32.totalorder %s27, 0
      %p120 = por %p118, %p119
      %s122 = sadd.s32 %s121, 1
      %p125 = scmp.eq.s32.totalorder %s21, 1
      %p126 = scmp.ne.s32.totalorder %s121, %s123
      %p127 = scmp.eq.s32.totalorder %s21, 0
      %p128 = por %p126, %p127
      %p129 = scmp.ne.s32.totalorder %s121, %s123
      %p130 = scmp.eq.s32.totalorder %s26, 1
      %p131 = por %p129, %p130
      %p132 = scmp.ne.s32.totalorder %s123, %s124
      %p133 = scmp.eq.s32.totalorder %s26, 0
      %p134 = por %p132, %p133
      %p135 = scmp.ne.s32.totalorder %s123, %s124
      %p136 = scmp.eq.s32.totalorder %s27, 1
      %p137 = por %p135, %p136
      %p139 = scmp.ne.s32.totalorder %s124, %s138
      %p140 = scmp.eq.s32.totalorder %s27, 0
      %p141 = por %p139, %p140
      %s143 = sadd.s32 %s142, 1
      %p146 = scmp.eq.s32.totalorder %s21, 1
      %p147 = scmp.ne.s32.totalorder %s142, %s144
      %p148 = scmp.eq.s32.totalorder %s21, 0
      %p149 = por %p147, %p148
      %p150 = scmp.ne.s32.totalorder %s142, %s144
      %p151 = scmp.eq.s32.totalorder %s26, 1
      %p152 = por %p150, %p151
      %p153 = scmp.ne.s32.totalorder %s144, %s145
      %p154 = scmp.eq.s32.totalorder %s26, 0
      %p155 = por %p153, %p154
      %p156 = scmp.ne.s32.totalorder %s144, %s145
      %p157 = scmp.eq.s32.totalorder %s27, 1
      %p158 = por %p156, %p157
      %p160 = scmp.ne.s32.totalorder %s145, %s159
      %p161 = scmp.eq.s32.totalorder %s27, 0
      %p162 = por %p160, %p161
      %s163 = ssub.s32 %s28, %s40
      %s164 = ssub.s32 %s29, %s36
      %s165 = sor.u32 %s163, %s164
      %p166 = scmp.eq.s32.totalorder %s165, 0
      %s168 = sadd.s32 %s167, 1
      %s169 = scalar_select %p166, %s167, %s168
      %p172 = pneg %p166
      %p173 = scmp.eq.s32.totalorder %s21, 1
      %p174 = por %p172, %p173
      %p175 = scmp.ne.s32.totalorder %s167, %s170
      %p176 = scmp.eq.s32.totalorder %s21, 0
      %p177 = por %p175, %p176
      %p178 = scmp.ne.s32.totalorder %s167, %s170
      %p179 = scmp.eq.s32.totalorder %s26, 1
      %p180 = por %p178, %p179
      %p181 = scmp.ne.s32.totalorder %s170, %s171
      %p182 = scmp.eq.s32.totalorder %s26, 0
      %p183 = por %p181, %p182
      %p184 = scmp.ne.s32.totalorder %s170, %s171
      %p185 = scmp.eq.s32.totalorder %s27, 1
      %p186 = por %p184, %p185
      %p188 = scmp.ne.s32.totalorder %s171, %s187
      %p189 = scmp.eq.s32.totalorder %s27, 0
      %p190 = por %p188, %p189
      %p191 = scmp.le.s32.totalorder 1, %s21
      %p192 = scmp.lt.s32.totalorder %s21, 3
      %p193 = pnand %p191, %p192
      %p194 = pneg %p193
      // Predicated region
      $region9: #{tpu_custom_call.1} parent=5 // pred_check
        _
      $region10: #{tpu_custom_call.1} parent=5 // pred_check_branch
        %196 = sbr.rel (%p193) target = $region12
      $region11: #{tpu_custom_call.1} parent=5 // pred_region
        %s197 = ssub.s32 %s21, 1
        // Predicated region
        $region13: #{tpu_custom_call.1} parent=11 // pred_check
          %p198 = pneg %p134
        $region14: #{tpu_custom_call.1} parent=11 // pred_check_branch
          %200 = sbr.rel (%p198) target = $region16
        $region15: #{tpu_custom_call.1} parent=11 // pred_region
          %202 = vsyncadd [#allocation9], 0
          %s203 = sshll.u32 %s3, 4
          %s204 = int_to_ptr.hbm [resolvable:$true] %s203
          %s205 = sshll.u32 [#allocation8], 4
          %s206 = int_to_ptr.vmem [resolvable:$true] %s205
          %211 = dma.hbm_to_vmem [thread:$0]  %s204, 512, %s206, [#allocation9], 128, 128, 8
        $region16: #{tpu_custom_call.1} parent=11 // pred_fallthru
          _
        // Predicated region
        $region17: #{tpu_custom_call.1} parent=11 // pred_check
          %p212 = pneg %p155
        $region18: #{tpu_custom_call.1} parent=11 // pred_check_branch
          %214 = sbr.rel (%p212) target = $region20
        $region19: #{tpu_custom_call.1} parent=11 // pred_region
          _
        $region20: #{tpu_custom_call.1} parent=11 // pred_fallthru
          _
      $region12: #{tpu_custom_call.1} parent=5 // pred_fallthru
        _
      %p215 = scmp.lt.s32.totalorder %s21, 2
      // Predicated region
      $region21: #{tpu_custom_call.1} parent=5 // pred_check
        %p216 = pneg %p215
      $region22: #{tpu_custom_call.1} parent=5 // pred_check_branch
        %218 = sbr.rel (%p216) target = $region24
      $region23: #{tpu_custom_call.1} parent=5 // pred_region
        // Predicated region
        $region25: #{tpu_custom_call.1} parent=23 // pred_check
          %p219 = pneg %p55
        $region26: #{tpu_custom_call.1} parent=23 // pred_check_branch
          %221 = sbr.rel (%p219) target = $region28
        $region27: #{tpu_custom_call.1} parent=23 // pred_region
          %s222 = sand.u32 %s45, 1
          %s223 = scalar_lea.sflag [#allocation3], %s222
          %s224 = sand.u32 %s45, 1
          %s225 = smul.addr %s224, 32
          %s226 = scalar_lea.vmem [#allocation2], %s225
          %228 = vsyncadd %s223, 0
          %s229 = smul.addr %s28, 4
          %s230 = sadd.s32 %s29, %s229
          %s231 = smul.addr %s230, 8
          %s232 = scalar_lea.hbm %s0, %s231
          %s233 = sshll.u32 %s232, 4
          %s234 = int_to_ptr.hbm [resolvable:$true] %s233
          %s235 = sshll.u32 %s226, 4
          %s236 = int_to_ptr.vmem [resolvable:$true] %s235
          %241 = dma.hbm_to_vmem [thread:$0]  %s234, 512, %s236, %s223, 128, 128, 8
        $region28: #{tpu_custom_call.1} parent=23 // pred_fallthru
          _
        // Predicated region
        $region29: #{tpu_custom_call.1} parent=23 // pred_check
          %p242 = pneg %p81
        $region30: #{tpu_custom_call.1} parent=23 // pred_check_branch
          %244 = sbr.rel (%p242) target = $region32
        $region31: #{tpu_custom_call.1} parent=23 // pred_region
          %s245 = sand.u32 %s21, 1
          %s246 = scalar_lea.sflag [#allocation6], %s245
          %s247 = sand.u32 %s71, 1
          %s248 = smul.addr %s247, 32
          %s249 = scalar_lea.vmem [#allocation5], %s248
          %251 = vsyncadd %s246, 0
          %s252 = smul.addr %s28, 4
          %s253 = smul.addr %s252, 8
          %s254 = scalar_lea.hbm %s1, %s253
          %s255 = sshll.u32 %s254, 4
          %s256 = int_to_ptr.hbm [resolvable:$true] %s255
          %s257 = sshll.u32 %s249, 4
          %s258 = int_to_ptr.vmem [resolvable:$true] %s257
          %263 = dma.hbm_to_vmem [thread:$0]  %s256, 512, %s258, %s246, 128, 128, 8
        $region32: #{tpu_custom_call.1} parent=23 // pred_fallthru
          _
        // Predicated region
        $region33: #{tpu_custom_call.1} parent=23 // pred_check
          %p264 = pneg %p107
        $region34: #{tpu_custom_call.1} parent=23 // pred_check_branch
          %266 = sbr.rel (%p264) target = $region36
        $region35: #{tpu_custom_call.1} parent=23 // pred_region
          %s267 = sand.u32 %s21, 1
          %s268 = scalar_lea.sflag [#allocation6], %s267
          %s269 = sand.u32 %s97, 1
          %s270 = smul.addr %s269, 32
          %s271 = scalar_lea.vmem [#allocation7], %s270
          %273 = vsyncadd %s268, 0
          %s274 = smul.addr %s28, 4
          %s275 = smul.addr %s274, 8
          %s276 = scalar_lea.hbm %s2, %s275
          %s277 = sshll.u32 %s276, 4
          %s278 = int_to_ptr.hbm [resolvable:$true] %s277
          %s279 = sshll.u32 %s271, 4
          %s280 = int_to_ptr.vmem [resolvable:$true] %s279
          %285 = dma.hbm_to_vmem [thread:$0]  %s278, 512, %s280, %s268, 128, 128, 8
        $region36: #{tpu_custom_call.1} parent=23 // pred_fallthru
          _
      $region24: #{tpu_custom_call.1} parent=5 // pred_fallthru
        _
      %p286 = scmp.le.s32.totalorder 1, %s21
      %p287 = scmp.lt.s32.totalorder %s21, 3
      %p288 = pnand %p286, %p287
      %p289 = pneg %p288
      // Predicated region
      $region37: #{tpu_custom_call.1} parent=5 // pred_check
        _
      $region38: #{tpu_custom_call.1} parent=5 // pred_check_branch
        %291 = sbr.rel (%p288) target = $region40
      $region39: #{tpu_custom_call.1} parent=5 // pred_region
        %s292 = ssub.s32 %s21, 1
        %s293 = sand.u32 %s48, 1
        %s294 = scalar_lea.sflag [#allocation3], %s293
        %s295 = sand.u32 %s48, 1
        %s296 = smul.addr %s295, 32
        %s297 = scalar_lea.vmem [#allocation2], %s296
        // Predicated region
        $region41: #{tpu_custom_call.1} parent=39 // pred_check
          %p298 = pneg %p61
        $region42: #{tpu_custom_call.1} parent=39 // pred_check_branch
          %300 = sbr.rel (%p298) target = $region44
        $region43: #{tpu_custom_call.1} parent=39 // pred_region
          %302 = dma.done %s294, 512
        $region44: #{tpu_custom_call.1} parent=39 // pred_fallthru
          _
        %s303 = sand.u32 %s26, 1
        %s304 = scalar_lea.sflag [#allocation6], %s303
        %s305 = sand.u32 %s74, 1
        %s306 = smul.addr %s305, 32
        %s307 = scalar_lea.vmem [#allocation5], %s306
        // Predicated region
        $region45: #{tpu_custom_call.1} parent=39 // pred_check
          %p308 = pneg %p87
        $region46: #{tpu_custom_call.1} parent=39 // pred_check_branch
          %310 = sbr.rel (%p308) target = $region48
        $region47: #{tpu_custom_call.1} parent=39 // pred_region
          %312 = dma.done %s304, 512
        $region48: #{tpu_custom_call.1} parent=39 // pred_fallthru
          _
        %s313 = sand.u32 %s26, 1
        %s314 = scalar_lea.sflag [#allocation6], %s313
        %s315 = sand.u32 %s100, 1
        %s316 = smul.addr %s315, 32
        %s317 = scalar_lea.vmem [#allocation7], %s316
        // Predicated region
        $region49: #{tpu_custom_call.1} parent=39 // pred_check
          %p318 = pneg %p113
        $region50: #{tpu_custom_call.1} parent=39 // pred_check_branch
          %320 = sbr.rel (%p318) target = $region52
        $region51: #{tpu_custom_call.1} parent=39 // pred_region
          %322 = dma.done %s314, 512
        $region52: #{tpu_custom_call.1} parent=39 // pred_fallthru
          _
        // Predicated region
        $region53: #{tpu_custom_call.1} parent=39 // pred_check
          %p323 = pneg %p134
        $region54: #{tpu_custom_call.1} parent=39 // pred_check_branch
          %325 = sbr.rel (%p323) target = $region56
        $region55: #{tpu_custom_call.1} parent=39 // pred_region
          %327 = dma.done [#allocation9], 512
        $region56: #{tpu_custom_call.1} parent=39 // pred_fallthru
          _
        %s328 = sand.u32 %s48, 1
        %s329 = scalar_lea.sflag [#allocation3], %s328
        %s330 = sand.u32 %s48, 1
        %s331 = smul.addr %s330, 32
        %s332 = scalar_lea.vmem [#allocation2], %s331
        %p333 = pneg %p61
        %p334 = pneg %p58
        %s335 = sand.u32 %s26, 1
        %s336 = scalar_lea.sflag [#allocation6], %s335
        %s337 = sand.u32 %s74, 1
        %s338 = smul.addr %s337, 32
        %s339 = scalar_lea.vmem [#allocation5], %s338
        %p340 = pneg %p87
        %p341 = pneg %p84
        %s342 = sand.u32 %s26, 1
        %s343 = scalar_lea.sflag [#allocation6], %s342
        %s344 = sand.u32 %s100, 1
        %s345 = smul.addr %s344, 32
        %s346 = scalar_lea.vmem [#allocation7], %s345
        %p347 = pneg %p113
        %p348 = pneg %p110
        %p349 = pneg %p134
        %p350 = pneg %p131
        %p351 = pneg %p155
        %p352 = pneg %p152
        %p353 = pneg %p183
        %p354 = pneg %p180
        %s355 = sand.u32 %s170, 1
        %s356 = scalar_lea.sflag [#allocation4], %s355
        %s357 = sand.u32 %s170, 1
        %s358 = smul.addr %s357, 8
        %s359 = scalar_lea.vmem [#allocation10], %s358
        %v360 = vld [vmem:[%s297] sm:$0xff]
        %v361 = vld [vmem:[%s297 + $0x8] sm:$0xff]
        %v362 = vld [vmem:[%s297 + $0x10] sm:$0xff]
        %v363 = vld [vmem:[%s297 + $0x18] sm:$0xff]
        %v364 = vld [vmem:[%s307] sm:$0xff]
        %v365 = vld [vmem:[%s307 + $0x8] sm:$0xff]
        %v366 = vld [vmem:[%s307 + $0x10] sm:$0xff]
        %v367 = vld [vmem:[%s307 + $0x18] sm:$0xff]
        %v368 = vld [vmem:[%s317] sm:$0xff]
        %v369 = vld [vmem:[%s317 + $0x8] sm:$0xff]
        %v370 = vld [vmem:[%s317 + $0x10] sm:$0xff]
        %v371 = vld [vmem:[%s317 + $0x18] sm:$0xff]
        %vm372 = vcmask 64512
        %v374 = vsel %vm372, %v360, 0
        %v377 = vsel %vm372, %v364, 0
        %379 = vmatpush.xpose.msra.mxu0 0.0
        %380 = vmatpush.xpose.msra.mxu0 0.0
        %381 = vmatpush.xpose.msra.mxu0 0.0
        %382 = vmatpush.xpose.msra.mxu0 0.0
        %383 = vmatpush.xpose.msra.mxu0 0.0
        %384 = vmatpush.xpose.msra.mxu0 0.0
        %385 = vmatpush.xpose.msra.mxu0 0.0
        %386 = vmatpush.xpose.msra.mxu0 0.0
        %387 = vmatpush.xpose.msra.mxu0 0.0
        %388 = vmatpush.xpose.msra.mxu0 0.0
        %389 = vmatpush.xpose.msra.mxu0 0.0
        %390 = vmatpush.xpose.msra.mxu0 0.0
        %391 = vmatpush.xpose.msra.mxu0 0.0
        %392 = vmatpush.xpose.msra.mxu0 0.0
        %393 = vmatpush.xpose.msra.mxu0 0.0
        %394 = vmatpush.xpose.msra.mxu0 %v377
        %395 = vmatmul.f32.gmra.mxu0 %v374
        %v396 = vpop.f32.mrf.mxu0
        %v397 = vadd.f32 0.0, %v396
        %398 = vdwg.mxu0
        %v400 = vsel %vm372, %v361, 0
        %v403 = vsel %vm372, %v365, 0
        %405 = vmatpush.xpose.msra.mxu0 0.0
        %406 = vmatpush.xpose.msra.mxu0 0.0
        %407 = vmatpush.xpose.msra.mxu0 0.0
        %408 = vmatpush.xpose.msra.mxu0 0.0
        %409 = vmatpush.xpose.msra.mxu0 0.0
        %410 = vmatpush.xpose.msra.mxu0 0.0
        %411 = vmatpush.xpose.msra.mxu0 0.0
        %412 = vmatpush.xpose.msra.mxu0 0.0
        %413 = vmatpush.xpose.msra.mxu0 0.0
        %414 = vmatpush.xpose.msra.mxu0 0.0
        %415 = vmatpush.xpose.msra.mxu0 0.0
        %416 = vmatpush.xpose.msra.mxu0 0.0
        %417 = vmatpush.xpose.msra.mxu0 0.0
        %418 = vmatpush.xpose.msra.mxu0 0.0
        %419 = vmatpush.xpose.msra.mxu0 0.0
        %420 = vmatpush.xpose.msra.mxu0 %v403
        %421 = vmatmul.f32.gmra.mxu0 %v400
        %v422 = vpop.f32.mrf.mxu0
        %v423 = vadd.f32 0.0, %v422
        %424 = vdwg.mxu0
        %v426 = vsel %vm372, %v362, 0
        %v429 = vsel %vm372, %v366, 0
        %431 = vmatpush.xpose.msra.mxu0 0.0
        %432 = vmatpush.xpose.msra.mxu0 0.0
        %433 = vmatpush.xpose.msra.mxu0 0.0
        %434 = vmatpush.xpose.msra.mxu0 0.0
        %435 = vmatpush.xpose.msra.mxu0 0.0
        %436 = vmatpush.xpose.msra.mxu0 0.0
        %437 = vmatpush.xpose.msra.mxu0 0.0
        %438 = vmatpush.xpose.msra.mxu0 0.0
        %439 = vmatpush.xpose.msra.mxu0 0.0
        %440 = vmatpush.xpose.msra.mxu0 0.0
        %441 = vmatpush.xpose.msra.mxu0 0.0
        %442 = vmatpush.xpose.msra.mxu0 0.0
        %443 = vmatpush.xpose.msra.mxu0 0.0
        %444 = vmatpush.xpose.msra.mxu0 0.0
        %445 = vmatpush.xpose.msra.mxu0 0.0
        %446 = vmatpush.xpose.msra.mxu0 %v429
        %447 = vmatmul.f32.gmra.mxu0 %v426
        %v448 = vpop.f32.mrf.mxu0
        %v449 = vadd.f32 0.0, %v448
        %450 = vdwg.mxu0
        %v452 = vsel %vm372, %v363, 0
        %v455 = vsel %vm372, %v367, 0
        %457 = vmatpush.xpose.msra.mxu0 0.0
        %458 = vmatpush.xpose.msra.mxu0 0.0
        %459 = vmatpush.xpose.msra.mxu0 0.0
        %460 = vmatpush.xpose.msra.mxu0 0.0
        %461 = vmatpush.xpose.msra.mxu0 0.0
        %462 = vmatpush.xpose.msra.mxu0 0.0
        %463 = vmatpush.xpose.msra.mxu0 0.0
        %464 = vmatpush.xpose.msra.mxu0 0.0
        %465 = vmatpush.xpose.msra.mxu0 0.0
        %466 = vmatpush.xpose.msra.mxu0 0.0
        %467 = vmatpush.xpose.msra.mxu0 0.0
        %468 = vmatpush.xpose.msra.mxu0 0.0
        %469 = vmatpush.xpose.msra.mxu0 0.0
        %470 = vmatpush.xpose.msra.mxu0 0.0
        %471 = vmatpush.xpose.msra.mxu0 0.0
        %472 = vmatpush.xpose.msra.mxu0 %v455
        %473 = vmatmul.f32.gmra.mxu0 %v452
        %v474 = vpop.f32.mrf.mxu0
        %v475 = vadd.f32 0.0, %v474
        %476 = vdwg.mxu0
        %v477 = vsel %vm372, %v397, -inf
        %478 = vmax.xlane.f32.xlu0 %v477
        %v479 = vpop.xlane.xlu0 %478
        %v480 = vsel %vm372, %v423, -inf
        %481 = vmax.xlane.f32.xlu0 %v480
        %v482 = vpop.xlane.xlu0 %481
        %v483 = vsel %vm372, %v449, -inf
        %484 = vmax.xlane.f32.xlu0 %v483
        %v485 = vpop.xlane.xlu0 %484
        %v486 = vsel %vm372, %v475, -inf
        %487 = vmax.xlane.f32.xlu0 %v486
        %v488 = vpop.xlane.xlu0 %487
        %v489 = vsub.f32 %v397, %v479
        %v490 = vsub.f32 %v423, %v482
        %v491 = vsub.f32 %v449, %v485
        %v492 = vsub.f32 %v475, %v488
        %v493 = vmul.f32 %v489, 1.442695
        %v494 = vpow.pop %v493
        %v495 = vmul.f32 %v490, 1.442695
        %v496 = vpow.pop %v495
        %v497 = vmul.f32 %v491, 1.442695
        %v498 = vpow.pop %v497
        %v499 = vmul.f32 %v492, 1.442695
        %v500 = vpow.pop %v499
        %v501 = vsel %vm372, %v494, 0.0
        %502 = vadd.xlane.f32.xlu0 %v501
        %v503 = vpop.xlane.xlu0 %502
        %v504 = vsel %vm372, %v496, 0.0
        %505 = vadd.xlane.f32.xlu0 %v504
        %v506 = vpop.xlane.xlu0 %505
        %v507 = vsel %vm372, %v498, 0.0
        %508 = vadd.xlane.f32.xlu0 %v507
        %v509 = vpop.xlane.xlu0 %508
        %v510 = vsel %vm372, %v500, 0.0
        %511 = vadd.xlane.f32.xlu0 %v510
        %v512 = vpop.xlane.xlu0 %511
        %v513 = vrcp.pop %v503
        %v514 = vmul.f32 %v503, %v513
        %v515 = vsub.f32 1.0, %v514
        %v516 = vmul.f32 %v513, %v515
        %v517 = vadd.f32 %v513, %v516
        %vm518 = vweird.f32 %v503
        %vm519 = vweird.f32 %v513
        %vm520 = vmor %vm518, %vm519
        %v521 = vsel %vm520, %v513, %v517
        %v522 = vand.u32 2147483647, %v503
        %vm523 = vcmp.eq.f32.partialorder %v522, 8.507059e+37
        %v524 = vand.u32 %v503, 2147483648
        %v525 = vor.u32 1.1754944e-38, %v524
        %v526 = vsel %vm523, %v525, %v521
        %v527 = vmul.f32 %v494, %v526
        %v528 = vrcp.pop %v506
        %v529 = vmul.f32 %v506, %v528
        %v530 = vsub.f32 1.0, %v529
        %v531 = vmul.f32 %v528, %v530
        %v532 = vadd.f32 %v528, %v531
        %vm533 = vweird.f32 %v506
        %vm534 = vweird.f32 %v528
        %vm535 = vmor %vm533, %vm534
        %v536 = vsel %vm535, %v528, %v532
        %v537 = vand.u32 2147483647, %v506
        %vm538 = vcmp.eq.f32.partialorder %v537, 8.507059e+37
        %v539 = vand.u32 %v506, 2147483648
        %v540 = vor.u32 1.1754944e-38, %v539
        %v541 = vsel %vm538, %v540, %v536
        %v542 = vmul.f32 %v496, %v541
        %v543 = vrcp.pop %v509
        %v544 = vmul.f32 %v509, %v543
        %v545 = vsub.f32 1.0, %v544
        %v546 = vmul.f32 %v543, %v545
        %v547 = vadd.f32 %v543, %v546
        %vm548 = vweird.f32 %v509
        %vm549 = vweird.f32 %v543
        %vm550 = vmor %vm548, %vm549
        %v551 = vsel %vm550, %v543, %v547
        %v552 = vand.u32 2147483647, %v509
        %vm553 = vcmp.eq.f32.partialorder %v552, 8.507059e+37
        %v554 = vand.u32 %v509, 2147483648
        %v555 = vor.u32 1.1754944e-38, %v554
        %v556 = vsel %vm553, %v555, %v551
        %v557 = vmul.f32 %v498, %v556
        %v558 = vrcp.pop %v512
        %v559 = vmul.f32 %v512, %v558
        %v560 = vsub.f32 1.0, %v559
        %v561 = vmul.f32 %v558, %v560
        %v562 = vadd.f32 %v558, %v561
        %vm563 = vweird.f32 %v512
        %vm564 = vweird.f32 %v558
        %vm565 = vmor %vm563, %vm564
        %v566 = vsel %vm565, %v558, %v562
        %v567 = vand.u32 2147483647, %v512
        %vm568 = vcmp.eq.f32.partialorder %v567, 8.507059e+37
        %v569 = vand.u32 %v512, 2147483648
        %v570 = vor.u32 1.1754944e-38, %v569
        %v571 = vsel %vm568, %v570, %v566
        %v572 = vmul.f32 %v500, %v571
        %v574 = vsel %vm372, %v527, 0
        %576 = vmatpush.msra.mxu0 0.0
        %577 = vmatpush.msra.mxu0 0.0
        %578 = vmatpush.msra.mxu0 0.0
        %579 = vmatpush.msra.mxu0 0.0
        %580 = vmatpush.msra.mxu0 0.0
        %581 = vmatpush.msra.mxu0 0.0
        %582 = vmatpush.msra.mxu0 0.0
        %583 = vmatpush.msra.mxu0 0.0
        %584 = vmatpush.msra.mxu0 0.0
        %585 = vmatpush.msra.mxu0 0.0
        %586 = vmatpush.msra.mxu0 0.0
        %587 = vmatpush.msra.mxu0 0.0
        %588 = vmatpush.msra.mxu0 0.0
        %589 = vmatpush.msra.mxu0 0.0
        %590 = vmatpush.msra.mxu0 0.0
        %591 = vmatpush.msra.mxu0 %v368
        %592 = vmatmul.f32.gmra.mxu0 %v574
        %v593 = vpop.f32.mrf.mxu0
        %v594 = vadd.f32 0.0, %v593
        %595 = vdwg.mxu0
        %v597 = vsel %vm372, %v542, 0
        %599 = vmatpush.msra.mxu0 0.0
        %600 = vmatpush.msra.mxu0 0.0
        %601 = vmatpush.msra.mxu0 0.0
        %602 = vmatpush.msra.mxu0 0.0
        %603 = vmatpush.msra.mxu0 0.0
        %604 = vmatpush.msra.mxu0 0.0
        %605 = vmatpush.msra.mxu0 0.0
        %606 = vmatpush.msra.mxu0 0.0
        %607 = vmatpush.msra.mxu0 0.0
        %608 = vmatpush.msra.mxu0 0.0
        %609 = vmatpush.msra.mxu0 0.0
        %610 = vmatpush.msra.mxu0 0.0
        %611 = vmatpush.msra.mxu0 0.0
        %612 = vmatpush.msra.mxu0 0.0
        %613 = vmatpush.msra.mxu0 0.0
        %614 = vmatpush.msra.mxu0 %v369
        %615 = vmatmul.f32.gmra.mxu0 %v597
        %v616 = vpop.f32.mrf.mxu0
        %v617 = vadd.f32 0.0, %v616
        %618 = vdwg.mxu0
        %v620 = vsel %vm372, %v557, 0
        %622 = vmatpush.msra.mxu0 0.0
        %623 = vmatpush.msra.mxu0 0.0
        %624 = vmatpush.msra.mxu0 0.0
        %625 = vmatpush.msra.mxu0 0.0
        %626 = vmatpush.msra.mxu0 0.0
        %627 = vmatpush.msra.mxu0 0.0
        %628 = vmatpush.msra.mxu0 0.0
        %629 = vmatpush.msra.mxu0 0.0
        %630 = vmatpush.msra.mxu0 0.0
        %631 = vmatpush.msra.mxu0 0.0
        %632 = vmatpush.msra.mxu0 0.0
        %633 = vmatpush.msra.mxu0 0.0
        %634 = vmatpush.msra.mxu0 0.0
        %635 = vmatpush.msra.mxu0 0.0
        %636 = vmatpush.msra.mxu0 0.0
        %637 = vmatpush.msra.mxu0 %v370
        %638 = vmatmul.f32.gmra.mxu0 %v620
        %v639 = vpop.f32.mrf.mxu0
        %v640 = vadd.f32 0.0, %v639
        %641 = vdwg.mxu0
        %v643 = vsel %vm372, %v572, 0
        %645 = vmatpush.msra.mxu0 0.0
        %646 = vmatpush.msra.mxu0 0.0
        %647 = vmatpush.msra.mxu0 0.0
        %648 = vmatpush.msra.mxu0 0.0
        %649 = vmatpush.msra.mxu0 0.0
        %650 = vmatpush.msra.mxu0 0.0
        %651 = vmatpush.msra.mxu0 0.0
        %652 = vmatpush.msra.mxu0 0.0
        %653 = vmatpush.msra.mxu0 0.0
        %654 = vmatpush.msra.mxu0 0.0
        %655 = vmatpush.msra.mxu0 0.0
        %656 = vmatpush.msra.mxu0 0.0
        %657 = vmatpush.msra.mxu0 0.0
        %658 = vmatpush.msra.mxu0 0.0
        %659 = vmatpush.msra.mxu0 0.0
        %660 = vmatpush.msra.mxu0 %v371
        %661 = vmatmul.f32.gmra.mxu0 %v643
        %v662 = vpop.f32.mrf.mxu0
        %v663 = vadd.f32 0.0, %v662
        %664 = vdwg.mxu0
        %v665 = vld [vmem:[#allocation8] sm:$0xff]
        %v666 = vld [vmem:[#allocation8 + $0x8] sm:$0xff]
        %v667 = vld [vmem:[#allocation8 + $0x10] sm:$0xff]
        %v668 = vld [vmem:[#allocation8 + $0x18] sm:$0xff]
        %v670 = vsel %vm372, %v594, 0
        %672 = vmatpush.msra.mxu0 0.0
        %673 = vmatpush.msra.mxu0 0.0
        %674 = vmatpush.msra.mxu0 0.0
        %675 = vmatpush.msra.mxu0 0.0
        %676 = vmatpush.msra.mxu0 0.0
        %677 = vmatpush.msra.mxu0 0.0
        %678 = vmatpush.msra.mxu0 0.0
        %679 = vmatpush.msra.mxu0 0.0
        %680 = vmatpush.msra.mxu0 0.0
        %681 = vmatpush.msra.mxu0 0.0
        %682 = vmatpush.msra.mxu0 0.0
        %683 = vmatpush.msra.mxu0 0.0
        %684 = vmatpush.msra.mxu0 0.0
        %685 = vmatpush.msra.mxu0 0.0
        %686 = vmatpush.msra.mxu0 0.0
        %687 = vmatpush.msra.mxu0 %v665
        %688 = vmatmul.f32.gmra.mxu0 %v670
        %v689 = vpop.f32.mrf.mxu0
        %v690 = vadd.f32 0.0, %v689
        %691 = vdwg.mxu0
        %v693 = vsel %vm372, %v617, 0
        %695 = vmatpush.msra.mxu0 0.0
        %696 = vmatpush.msra.mxu0 0.0
        %697 = vmatpush.msra.mxu0 0.0
        %698 = vmatpush.msra.mxu0 0.0
        %699 = vmatpush.msra.mxu0 0.0
        %700 = vmatpush.msra.mxu0 0.0
        %701 = vmatpush.msra.mxu0 0.0
        %702 = vmatpush.msra.mxu0 0.0
        %703 = vmatpush.msra.mxu0 0.0
        %704 = vmatpush.msra.mxu0 0.0
        %705 = vmatpush.msra.mxu0 0.0
        %706 = vmatpush.msra.mxu0 0.0
        %707 = vmatpush.msra.mxu0 0.0
        %708 = vmatpush.msra.mxu0 0.0
        %709 = vmatpush.msra.mxu0 0.0
        %710 = vmatpush.msra.mxu0 %v666
        %711 = vmatmul.f32.gmra.mxu0 %v693
        %v712 = vpop.f32.mrf.mxu0
        %v713 = vadd.f32 0.0, %v712
        %714 = vdwg.mxu0
        %v716 = vsel %vm372, %v640, 0
        %718 = vmatpush.msra.mxu0 0.0
        %719 = vmatpush.msra.mxu0 0.0
        %720 = vmatpush.msra.mxu0 0.0
        %721 = vmatpush.msra.mxu0 0.0
        %722 = vmatpush.msra.mxu0 0.0
        %723 = vmatpush.msra.mxu0 0.0
        %724 = vmatpush.msra.mxu0 0.0
        %725 = vmatpush.msra.mxu0 0.0
        %726 = vmatpush.msra.mxu0 0.0
        %727 = vmatpush.msra.mxu0 0.0
        %728 = vmatpush.msra.mxu0 0.0
        %729 = vmatpush.msra.mxu0 0.0
        %730 = vmatpush.msra.mxu0 0.0
        %731 = vmatpush.msra.mxu0 0.0
        %732 = vmatpush.msra.mxu0 0.0
        %733 = vmatpush.msra.mxu0 %v667
        %734 = vmatmul.f32.gmra.mxu0 %v716
        %v735 = vpop.f32.mrf.mxu0
        %v736 = vadd.f32 0.0, %v735
        %737 = vdwg.mxu0
        %v739 = vsel %vm372, %v663, 0
        %741 = vmatpush.msra.mxu0 0.0
        %742 = vmatpush.msra.mxu0 0.0
        %743 = vmatpush.msra.mxu0 0.0
        %744 = vmatpush.msra.mxu0 0.0
        %745 = vmatpush.msra.mxu0 0.0
        %746 = vmatpush.msra.mxu0 0.0
        %747 = vmatpush.msra.mxu0 0.0
        %748 = vmatpush.msra.mxu0 0.0
        %749 = vmatpush.msra.mxu0 0.0
        %750 = vmatpush.msra.mxu0 0.0
        %751 = vmatpush.msra.mxu0 0.0
        %752 = vmatpush.msra.mxu0 0.0
        %753 = vmatpush.msra.mxu0 0.0
        %754 = vmatpush.msra.mxu0 0.0
        %755 = vmatpush.msra.mxu0 0.0
        %756 = vmatpush.msra.mxu0 %v668
        %757 = vmatmul.f32.gmra.mxu0 %v739
        %v758 = vpop.f32.mrf.mxu0
        %v759 = vadd.f32 0.0, %v758
        %760 = vdwg.mxu0
        %vm761 = vcmask 261120
        %v762 = vsel %vm761, %v690, 0.0
        %v763 = vsel %vm761, %v713, 0.0
        %v764 = vadd.f32 %v762, %v763
        %v765 = vsel %vm761, %v736, 0.0
        %v766 = vadd.f32 %v764, %v765
        %v767 = vsel %vm761, %v759, 0.0
        %v768 = vadd.f32 %v766, %v767
        %v769 = vld [vmem:[%s4] sm:$0x1]
        %v771 = vperm.slane %v769, 0
        %v773 = vadd.f32 %v768, %v771
        %774 = vst.msk [vmem:[%s359] sm:$0xff] %vm761, %v773
        %s775 = sand.u32 %s170, 1
        %s776 = scalar_lea.sflag [#allocation4], %s775
        %s777 = sand.u32 %s170, 1
        %s778 = smul.addr %s777, 8
        %s779 = scalar_lea.vmem [#allocation10], %s778
        // Predicated region
        $region57: #{tpu_custom_call.1} parent=39 // pred_check
          %p780 = pneg %p180
        $region58: #{tpu_custom_call.1} parent=39 // pred_check_branch
          %782 = sbr.rel (%p780) target = $region60
        $region59: #{tpu_custom_call.1} parent=39 // pred_region
          %784 = vsyncadd %s776, 0
          %s785 = sadd.s32 %s31, %s30
          %s786 = smul.addr %s785, 8
          %s787 = scalar_lea.hbm %s5, %s786
          %s789 = sshll.u32 %s779, 4
          %s790 = int_to_ptr.vmem [resolvable:$true] %s789
          %s791 = sshll.u32 %s787, 4
          %s792 = int_to_ptr.hbm [resolvable:$true] %s791
          %794 = dma.vmem_to_hbm [thread:$0]  %s790, 128, %s792, %s776
        $region60: #{tpu_custom_call.1} parent=39 // pred_fallthru
          _
      $region40: #{tpu_custom_call.1} parent=5 // pred_fallthru
        _
      %p795 = scmp.le.s32.totalorder 2, %s21
      // Predicated region
      $region61: #{tpu_custom_call.1} parent=5 // pred_check
        %p796 = pneg %p795
      $region62: #{tpu_custom_call.1} parent=5 // pred_check_branch
        %798 = sbr.rel (%p796) target = $region64
      $region63: #{tpu_custom_call.1} parent=5 // pred_region
        %s799 = ssub.s32 %s21, 2
        // Predicated region
        $region65: #{tpu_custom_call.1} parent=63 // pred_check
          %p800 = pneg %p186
        $region66: #{tpu_custom_call.1} parent=63 // pred_check_branch
          %802 = sbr.rel (%p800) target = $region68
        $region67: #{tpu_custom_call.1} parent=63 // pred_region
          %s803 = sand.u32 %s171, 1
          %s804 = scalar_lea.sflag [#allocation4], %s803
          %s805 = sand.u32 %s171, 1
          %s806 = smul.addr %s805, 8
          %s807 = scalar_lea.vmem [#allocation10], %s806
          %809 = dma.done %s804, 128
        $region68: #{tpu_custom_call.1} parent=63 // pred_fallthru
          _
      $region64: #{tpu_custom_call.1} parent=5 // pred_fallthru
        _
    $region6: #{tpu_custom_call.1} parent=1 // loop_footer
      %s25 = sadd.s32 1, %s21
    $region7: #{tpu_custom_call.1} parent=1 // loop_footer_branch
      %20 = sbr.rel target = $region3
    $region8: #{tpu_custom_call.1} parent=1 // loop_exit
      _
    %810 = vsyncpa [#allocation3], 1
    %s811 = scalar_lea.sflag [#allocation3], 1
    %812 = vsyncpa %s811, 1
    %813 = vsyncpa [#allocation6], 1
    %s814 = scalar_lea.sflag [#allocation6], 1
    %815 = vsyncpa %s814, 1
    %816 = vsyncpa [#allocation9], 1
    %817 = vsyncpa [#allocation4], 1
    %s818 = scalar_lea.sflag [#allocation4], 1
    %819 = vsyncpa %s818, 1

</llo_original>
